<compile_context>
chip_gen: v6e
topology: v6e:2x2x1
jax: 0.10.0
libtpu: 0.0.40
codegen_flags: <defaults>
</compile_context>

<pallas_src>
import numpy as np
import jax
import jax.numpy as jnp
from jax import lax
from jax.experimental import pallas as pl
from jax.experimental.pallas import tpu as pltpu


LANE = 128
SUBLANE = 8
TT_TARGET = 512       # token-tile size (rows) for the main attention kernel
NEG_INF = -1e30


def _round_up(a, b):
    return (a + b - 1) // b * b


# ----------------------------------------------------------------------------
# Kernel 1: proxy-side projections.  key = f_object(proxy), value = f_down(proxy)
# One batch element per grid step (M is tiny, no tiling needed).
# ----------------------------------------------------------------------------
def _proxy_kernel(p_ref, wo1_ref, bo1_ref, wo2_ref, bo2_ref, wd_ref, bd_ref,
                  k_ref, v_ref):
    p = p_ref[0].astype(jnp.bfloat16)                       # (M_pad, C_pad)

    def cbr(t, w_ref, b_ref):
        y = jnp.dot(t, w_ref[...], preferred_element_type=jnp.float32) + b_ref[...]
        return jnp.maximum(y, 0.0)

    k = cbr(cbr(p, wo1_ref, bo1_ref).astype(jnp.bfloat16), wo2_ref, bo2_ref)
    v = cbr(p, wd_ref, bd_ref)
    k_ref[0] = k.astype(k_ref.dtype)
    v_ref[0] = v.astype(v_ref.dtype)


# ----------------------------------------------------------------------------
# Kernel 2: pixel projection + attention + output projection.
# Grid = (N, T_pad // tT); both axes fully parallel (no cross-tile state).
# ----------------------------------------------------------------------------
def _attn_kernel(x_ref, k_ref, v_ref, mask_ref,
                 wp1_ref, bp1_ref, wp2_ref, bp2_ref, wu_ref, bu_ref,
                 out_ref):
    x = x_ref[0].astype(jnp.bfloat16)                       # (tT, C_pad)

    def cbr(t, w_ref, b_ref):
        y = jnp.dot(t, w_ref[...], preferred_element_type=jnp.float32) + b_ref[...]
        return jnp.maximum(y, 0.0)

    # query = f_pixel(x); key_channels^-0.5 already folded into wp2 / bp2.
    q = cbr(cbr(x, wp1_ref, bp1_ref).astype(jnp.bfloat16),
            wp2_ref, bp2_ref).astype(jnp.bfloat16)          # (tT, K_pad)

    k = k_ref[0]                                            # (M_pad, K_pad) bf16
    v = v_ref[0]                                            # (M_pad, K_pad) bf16

    # s = q @ k^T without materializing the transpose (contract last dims).
    s = lax.dot_general(q, k, (((1,), (1,)), ((), ())),
                        preferred_element_type=jnp.float32)  # (tT, M_pad)
    s = s + mask_ref[...]                                    # mask padded proxy rows

    s_max = jnp.max(s, axis=-1, keepdims=True)
    e = jnp.exp(s - s_max)
    denom = jnp.sum(e, axis=-1, keepdims=True)
    sim = e * pl.reciprocal(denom, approx=True)

    ctx = jnp.dot(sim.astype(jnp.bfloat16), v,
                  preferred_element_type=jnp.float32)        # (tT, K_pad)
    out = cbr(ctx.astype(jnp.bfloat16), wu_ref, bu_ref)      # (tT, C_pad)
    out_ref[0] = out.astype(out_ref.dtype)


# ----------------------------------------------------------------------------
# Parameter preparation: pad to lane-multiples, cast weights to bf16, fold the
# key_channels**-0.5 attention scale into the second f_pixel layer.
# ----------------------------------------------------------------------------
def _pad2d(a, rows, cols):
    return jnp.pad(a, ((0, rows - a.shape[0]), (0, cols - a.shape[1])))


def _prep_params(params, in_channels, key_channels):
    C_pad = _round_up(in_channels, LANE)
    K_pad = _round_up(key_channels, LANE)
    qk_scale = float(key_channels) ** -0.5

    def w(name, r, c, scale=None):
        a = params[name]
        if scale is not None:
            a = a * scale
        return _pad2d(a, r, c).astype(jnp.bfloat16)

    def b(name, c, scale=None):
        a = params[name]
        if scale is not None:
            a = a * scale
        return _pad2d(a, 1, c).astype(jnp.float32)

    pp = dict(
        wp1=w("wp1", C_pad, K_pad), bp1=b("bp1", K_pad),
        wp2=w("wp2", K_pad, K_pad, qk_scale), bp2=b("bp2", K_pad, qk_scale),
        wo1=w("wo1", C_pad, K_pad), bo1=b("bo1", K_pad),
        wo2=w("wo2", K_pad, K_pad), bo2=b("bo2", K_pad),
        wd=w("wd", C_pad, K_pad), bd=b("bd", K_pad),
        wu=w("wu", K_pad, C_pad), bu=b("bu", C_pad),
    )
    return pp, C_pad, K_pad


# ----------------------------------------------------------------------------
# Wrapper: NCHW glue, optional scale>1 pooling / nearest resize (plain JAX).
# ----------------------------------------------------------------------------
def object_attention_block(x_nchw, proxy_nchw, params, key_channels, scale=1):
    N, C, H, W = x_nchw.shape
    _, _, Hp, Wp = proxy_nchw.shape

    if scale > 1:
        # nn.MaxPool2d(kernel=(scale,scale)), default stride=kernel, floor mode.
        x_nchw = lax.reduce_window(
            x_nchw, -jnp.inf, lax.max,
            (1, 1, scale, scale), (1, 1, scale, scale), "VALID")
    Hs, Ws = x_nchw.shape[2], x_nchw.shape[3]
    T = Hs * Ws
    M = Hp * Wp

    pparams, C_pad, K_pad = _prep_params(params, C, key_channels)
    M_pad = _round_up(M, LANE)

    if T <= TT_TARGET:
        tT = _round_up(T, SUBLANE)
        T_pad = tT
    else:
        tT = TT_TARGET
        T_pad = _round_up(T, tT)

    # NCHW -> channels-last tokens.
    # TODO(synk): keep activations NHWC end-to-end in the surrounding model to
    # avoid these two full-HBM transposes.
    x = jnp.transpose(x_nchw, (0, 2, 3, 1)).reshape(N, T, C)
    p = jnp.transpose(proxy_nchw, (0, 2, 3, 1)).reshape(N, M, C)
    x = jnp.pad(x, ((0, 0), (0, T_pad - T), (0, C_pad - C)))
    p = jnp.pad(p, ((0, 0), (0, M_pad - M), (0, C_pad - C)))
    mask = jnp.where(jnp.arange(M_pad) < M, 0.0, NEG_INF).astype(jnp.float32)[None, :]

    # ---- kernel 1: key / value from proxy (once per batch element) ----------
    def fs1(shape):   # full-block spec, 1-axis grid
        return pl.BlockSpec(shape, lambda n: (0,) * len(shape))

    k, v = pl.pallas_call(
        _proxy_kernel,
        out_shape=(jax.ShapeDtypeStruct((N, M_pad, K_pad), jnp.bfloat16),
                   jax.ShapeDtypeStruct((N, M_pad, K_pad), jnp.bfloat16)),
        grid_spec=pltpu.PrefetchScalarGridSpec(
            num_scalar_prefetch=0,
            grid=(N,),
            in_specs=[pl.BlockSpec((1, M_pad, C_pad), lambda n: (n, 0, 0)),
                      fs1(pparams["wo1"].shape), fs1(pparams["bo1"].shape),
                      fs1(pparams["wo2"].shape), fs1(pparams["bo2"].shape),
                      fs1(pparams["wd"].shape), fs1(pparams["bd"].shape)],
            out_specs=[pl.BlockSpec((1, M_pad, K_pad), lambda n: (n, 0, 0)),
                       pl.BlockSpec((1, M_pad, K_pad), lambda n: (n, 0, 0))]),
        compiler_params=pltpu.CompilerParams(dimension_semantics=("parallel",)),
    )(p, pparams["wo1"], pparams["bo1"], pparams["wo2"], pparams["bo2"],
      pparams["wd"], pparams["bd"])

    # ---- kernel 2: pixel projections + attention, tiled over tokens ---------
    def fs2(shape):   # full-block spec, 2-axis grid
        return pl.BlockSpec(shape, lambda n, t: (0,) * len(shape))

    out_flat = pl.pallas_call(
        _attn_kernel,
        out_shape=jax.ShapeDtypeStruct((N, T_pad, C_pad), jnp.float32),
        grid_spec=pltpu.PrefetchScalarGridSpec(
            num_scalar_prefetch=0,
            grid=(N, T_pad // tT),
            in_specs=[pl.BlockSpec((1, tT, C_pad), lambda n, t: (n, t, 0)),
                      pl.BlockSpec((1, M_pad, K_pad), lambda n, t: (n, 0, 0)),
                      pl.BlockSpec((1, M_pad, K_pad), lambda n, t: (n, 0, 0)),
                      fs2(mask.shape),
                      fs2(pparams["wp1"].shape), fs2(pparams["bp1"].shape),
                      fs2(pparams["wp2"].shape), fs2(pparams["bp2"].shape),
                      fs2(pparams["wu"].shape), fs2(pparams["bu"].shape)],
            out_specs=pl.BlockSpec((1, tT, C_pad), lambda n, t: (n, t, 0))),
        compiler_params=pltpu.CompilerParams(
            dimension_semantics=("parallel", "parallel")),
    )(x, k, v, mask,
      pparams["wp1"], pparams["bp1"], pparams["wp2"], pparams["bp2"],
      pparams["wu"], pparams["bu"])

    ctx = out_flat[:, :T, :C].reshape(N, Hs, Ws, C).transpose(0, 3, 1, 2)

    if scale > 1:
        # F.interpolate(mode='nearest') back to (H, W): src = floor(dst*in/out)
        idx_h = (jnp.arange(H) * Hs) // H
        idx_w = (jnp.arange(W) * Ws) // W
        ctx = jnp.take(ctx, idx_h, axis=2)
        ctx = jnp.take(ctx, idx_w, axis=3)
    return ctx.astype(x_nchw.dtype)


# ----------------------------------------------------------------------------
# Deterministic parameter construction: Conv2d(1x1, bias=False) + BatchNorm2d
# (inference mode, synthetic running stats) folded to (W_eff, b_eff).
# ----------------------------------------------------------------------------
def _fold_conv_bn(key, cin, cout, eps=1e-5):
    kw, kg, kb, km, kv = jax.random.split(key, 5)
    w = jax.random.normal(kw, (cout, cin), jnp.float32) * (1.0 / np.sqrt(cin))
    gamma = 1.0 + 0.1 * jax.random.normal(kg, (cout,), jnp.float32)
    beta = 0.1 * jax.random.normal(kb, (cout,), jnp.float32)
    mean = 0.05 * jax.random.normal(km, (cout,), jnp.float32)
    var = 1.0 + 0.1 * jnp.abs(jax.random.normal(kv, (cout,), jnp.float32))
    s = gamma / jnp.sqrt(var + eps)
    w_eff = w.T * s[None, :]            # (cin, cout), acts as t @ w_eff
    b_eff = (beta - mean * s)[None, :]  # (1, cout)
    return w_eff, b_eff


def init_params(key, in_channels, key_channels):
    ks = jax.random.split(key, 6)
    wp1, bp1 = _fold_conv_bn(ks[0], in_channels, key_channels)
    wp2, bp2 = _fold_conv_bn(ks[1], key_channels, key_channels)
    wo1, bo1 = _fold_conv_bn(ks[2], in_channels, key_channels)
    wo2, bo2 = _fold_conv_bn(ks[3], key_channels, key_channels)
    wd, bd = _fold_conv_bn(ks[4], in_channels, key_channels)
    wu, bu = _fold_conv_bn(ks[5], key_channels, in_channels)
    return dict(wp1=wp1, bp1=bp1, wp2=wp2, bp2=bp2,
                wo1=wo1, bo1=bo1, wo2=wo2, bo2=bo2,
                wd=wd, bd=bd, wu=wu, bu=bu)


# ----------------------------------------------------------------------------
# Pure-JAX f32 reference (same math, no padding / bf16) for correctness checks.
# ----------------------------------------------------------------------------
def reference(x_nchw, proxy_nchw, params, key_channels, scale=1):
    N, C, H, W = x_nchw.shape
    if scale > 1:
        x_nchw = lax.reduce_window(
            x_nchw, -jnp.inf, lax.max,
            (1, 1, scale, scale), (1, 1, scale, scale), "VALID")
    Hs, Ws = x_nchw.shape[2], x_nchw.shape[3]
    x = jnp.transpose(x_nchw, (0, 2, 3, 1)).reshape(N, Hs * Ws, C)
    p = jnp.transpose(proxy_nchw, (0, 2, 3, 1)).reshape(N, -1, C)

    def cbr(t, w, b):
        return jnp.maximum(t @ w + b, 0.0)

    q = cbr(cbr(x, params["wp1"], params["bp1"]), params["wp2"], params["bp2"])
    k = cbr(cbr(p, params["wo1"], params["bo1"]), params["wo2"], params["bo2"])
    v = cbr(p, params["wd"], params["bd"])
    s = jnp.einsum("ntk,nmk->ntm", q, k) * (float(key_channels) ** -0.5)
    sim = jax.nn.softmax(s, axis=-1)
    ctx = jnp.einsum("ntm,nmk->ntk", sim, v)
    out = cbr(ctx, params["wu"], params["bu"])
    out = out.reshape(N, Hs, Ws, C).transpose(0, 3, 1, 2)
    if scale > 1:
        idx_h = (jnp.arange(H) * Hs) // H
        idx_w = (jnp.arange(W) * Ws) // W
        out = jnp.take(out, idx_h, axis=2)
        out = jnp.take(out, idx_w, axis=3)
    return out


if __name__ == "__main__":
    # Small shapes consistent with the module's forward:
    #   x: N x C x H x W, proxy: N x C x Hp x Wp (object regions x 1)
    N, C, K, H, W, M = 2, 32, 16, 8, 8, 8
    key = jax.random.PRNGKey(0)
    kx, kp, kparams = jax.random.split(key, 3)
    x = jax.random.normal(kx, (N, C, H, W), jnp.float32)
    proxy = jax.random.normal(kp, (N, C, M, 1), jnp.float32)
    params = init_params(kparams, in_channels=C, key_channels=K)

    # scale = 1 path
    out = object_attention_block(x, proxy, params, key_channels=K, scale=1)
    jax.block_until_ready(out)
    ref = reference(x, proxy, params, key_channels=K, scale=1)
    assert out.shape == (N, C, H, W), out.shape
    # bf16 matmuls + approx reciprocal vs f32 reference -> relaxed tolerance
    assert bool(jnp.allclose(out, ref, atol=5e-2, rtol=5e-2)), "mismatch (scale=1)"

    # scale > 1 path with H, W not divisible by scale (pool + nearest resize)
    x2 = jax.random.normal(jax.random.PRNGKey(1), (N, C, 9, 9), jnp.float32)
    out2 = object_attention_block(x2, proxy, params, key_channels=K, scale=2)
    jax.block_until_ready(out2)
    ref2 = reference(x2, proxy, params, key_channels=K, scale=2)
    assert out2.shape == (N, C, 9, 9), out2.shape
    assert bool(jnp.allclose(out2, ref2, atol=5e-2, rtol=5e-2)), "mismatch (scale=2)"

    print("KERNEL_OK")
</pallas_src>

<mosaic_0001>
module attributes {stable_mosaic.version = 11 : i64} {
  func.func @_proxy_kernel(%arg0: i32, %arg1: memref<1x128x128xf32, #tpu.memory_space<vmem>>, %arg2: memref<128x128xbf16, #tpu.memory_space<vmem>>, %arg3: memref<1x128xf32, #tpu.memory_space<vmem>>, %arg4: memref<128x128xbf16, #tpu.memory_space<vmem>>, %arg5: memref<1x128xf32, #tpu.memory_space<vmem>>, %arg6: memref<128x128xbf16, #tpu.memory_space<vmem>>, %arg7: memref<1x128xf32, #tpu.memory_space<vmem>>, %arg8: memref<1x128x128xbf16, #tpu.memory_space<vmem>>, %arg9: memref<1x128x128xbf16, #tpu.memory_space<vmem>>) attributes {dimension_semantics = [#tpu.dimension_semantics<parallel>], iteration_bounds = array<i64: 2>, scalar_prefetch = 0 : i64, scratch_operands = 0 : i64, tpu.core_type = #tpu.core_type<tc>, window_params = [{transform_indices = @transform_0, window_bounds = array<i64: 1, 128, 128>}, {pipeline_mode = #tpu.pipeline_mode<synchronous>, transform_indices = @transform_1, window_bounds = array<i64: 128, 128>}, {pipeline_mode = #tpu.pipeline_mode<synchronous>, transform_indices = @transform_2, window_bounds = array<i64: 1, 128>}, {pipeline_mode = #tpu.pipeline_mode<synchronous>, transform_indices = @transform_3, window_bounds = array<i64: 128, 128>}, {pipeline_mode = #tpu.pipeline_mode<synchronous>, transform_indices = @transform_4, window_bounds = array<i64: 1, 128>}, {pipeline_mode = #tpu.pipeline_mode<synchronous>, transform_indices = @transform_5, window_bounds = array<i64: 128, 128>}, {pipeline_mode = #tpu.pipeline_mode<synchronous>, transform_indices = @transform_6, window_bounds = array<i64: 1, 128>}, {transform_indices = @transform_7, window_bounds = array<i64: 1, 128, 128>}, {transform_indices = @transform_8, window_bounds = array<i64: 1, 128, 128>}]} {
    %c0 = arith.constant 0 : index
    %c0_0 = arith.constant 0 : index
    %c0_1 = arith.constant 0 : index
    %0 = vector.load %arg1[%c0, %c0_0, %c0_1] : memref<1x128x128xf32, #tpu.memory_space<vmem>>, vector<1x128x128xf32>
    %1 = vector.shape_cast %0 : vector<1x128x128xf32> to vector<128x128xf32>
    %2 = arith.truncf %1 : vector<128x128xf32> to vector<128x128xbf16>
    %c0_2 = arith.constant 0 : index
    %c0_3 = arith.constant 0 : index
    %3 = vector.load %arg2[%c0_2, %c0_3] : memref<128x128xbf16, #tpu.memory_space<vmem>>, vector<128x128xbf16>
    %cst = arith.constant dense<0.000000e+00> : vector<128x128xf32>
    %4 = tpu.matmul %2, %3, %cst {dimension_numbers = #tpu.dot_dimension_numbers<[1], [0], [0], [1], [0, 0, 1, 1], [], []>} : vector<128x128xbf16>, vector<128x128xbf16>, vector<128x128xf32> -> vector<128x128xf32>
    %c0_4 = arith.constant 0 : index
    %c0_5 = arith.constant 0 : index
    %5 = vector.load %arg3[%c0_4, %c0_5] : memref<1x128xf32, #tpu.memory_space<vmem>>, vector<1x128xf32>
    %6 = vector.broadcast %5 : vector<1x128xf32> to vector<128x128xf32>
    %7 = arith.addf %4, %6 : vector<128x128xf32>
    %cst_6 = arith.constant 0.000000e+00 : f32
    %8 = vector.broadcast %cst_6 : f32 to vector<128x128xf32>
    %9 = arith.maximumf %7, %8 : vector<128x128xf32>
    %10 = arith.truncf %9 : vector<128x128xf32> to vector<128x128xbf16>
    %c0_7 = arith.constant 0 : index
    %c0_8 = arith.constant 0 : index
    %11 = vector.load %arg4[%c0_7, %c0_8] : memref<128x128xbf16, #tpu.memory_space<vmem>>, vector<128x128xbf16>
    %cst_9 = arith.constant dense<0.000000e+00> : vector<128x128xf32>
    %12 = tpu.matmul %10, %11, %cst_9 {dimension_numbers = #tpu.dot_dimension_numbers<[1], [0], [0], [1], [0, 0, 1, 1], [], []>} : vector<128x128xbf16>, vector<128x128xbf16>, vector<128x128xf32> -> vector<128x128xf32>
    %c0_10 = arith.constant 0 : index
    %c0_11 = arith.constant 0 : index
    %13 = vector.load %arg5[%c0_10, %c0_11] : memref<1x128xf32, #tpu.memory_space<vmem>>, vector<1x128xf32>
    %14 = vector.broadcast %13 : vector<1x128xf32> to vector<128x128xf32>
    %15 = arith.addf %12, %14 : vector<128x128xf32>
    %cst_12 = arith.constant 0.000000e+00 : f32
    %16 = vector.broadcast %cst_12 : f32 to vector<128x128xf32>
    %17 = arith.maximumf %15, %16 : vector<128x128xf32>
    %c0_13 = arith.constant 0 : index
    %c0_14 = arith.constant 0 : index
    %18 = vector.load %arg6[%c0_13, %c0_14] : memref<128x128xbf16, #tpu.memory_space<vmem>>, vector<128x128xbf16>
    %cst_15 = arith.constant dense<0.000000e+00> : vector<128x128xf32>
    %19 = tpu.matmul %2, %18, %cst_15 {dimension_numbers = #tpu.dot_dimension_numbers<[1], [0], [0], [1], [0, 0, 1, 1], [], []>} : vector<128x128xbf16>, vector<128x128xbf16>, vector<128x128xf32> -> vector<128x128xf32>
    %c0_16 = arith.constant 0 : index
    %c0_17 = arith.constant 0 : index
    %20 = vector.load %arg7[%c0_16, %c0_17] : memref<1x128xf32, #tpu.memory_space<vmem>>, vector<1x128xf32>
    %21 = vector.broadcast %20 : vector<1x128xf32> to vector<128x128xf32>
    %22 = arith.addf %19, %21 : vector<128x128xf32>
    %cst_18 = arith.constant 0.000000e+00 : f32
    %23 = vector.broadcast %cst_18 : f32 to vector<128x128xf32>
    %24 = arith.maximumf %22, %23 : vector<128x128xf32>
    %25 = arith.truncf %17 : vector<128x128xf32> to vector<128x128xbf16>
    %c0_19 = arith.constant 0 : index
    %c0_20 = arith.constant 0 : index
    %c0_21 = arith.constant 0 : index
    %26 = vector.load %arg8[%c0_19, %c0_20, %c0_21] : memref<1x128x128xbf16, #tpu.memory_space<vmem>>, vector<1x128x128xbf16>
    %27 = vector.shape_cast %26 : vector<1x128x128xbf16> to vector<128x128xbf16>
    %28 = vector.shape_cast %25 : vector<128x128xbf16> to vector<1x128x128xbf16>
    tpu.vector_store %arg8[%c0_19, %c0_20, %c0_21], %28 {strides = array<i32>} : memref<1x128x128xbf16, #tpu.memory_space<vmem>>, vector<1x128x128xbf16>,
    %29 = arith.truncf %24 : vector<128x128xf32> to vector<128x128xbf16>
    %c0_22 = arith.constant 0 : index
    %c0_23 = arith.constant 0 : index
    %c0_24 = arith.constant 0 : index
    %30 = vector.load %arg9[%c0_22, %c0_23, %c0_24] : memref<1x128x128xbf16, #tpu.memory_space<vmem>>, vector<1x128x128xbf16>
    %31 = vector.shape_cast %30 : vector<1x128x128xbf16> to vector<128x128xbf16>
    %32 = vector.shape_cast %29 : vector<128x128xbf16> to vector<1x128x128xbf16>
    tpu.vector_store %arg9[%c0_22, %c0_23, %c0_24], %32 {strides = array<i32>} : memref<1x128x128xbf16, #tpu.memory_space<vmem>>, vector<1x128x128xbf16>,
    return
  }
  func.func @transform_0(%arg0: i32) -> (i32, i32, i32) {
    %c0_i32 = arith.constant 0 : i32
    %c0_i32_0 = arith.constant 0 : i32
    %c0_i32_1 = arith.constant 0 : i32
    return %arg0, %c0_i32, %c0_i32_0 : i32, i32, i32
  }
  func.func @transform_1(%arg0: i32) -> (i32, i32) {
    %c0_i32 = arith.constant 0 : i32
    %c0_i32_0 = arith.constant 0 : i32
    %c0_i32_1 = arith.constant 0 : i32
    return %c0_i32, %c0_i32_0 : i32, i32
  }
  func.func @transform_2(%arg0: i32) -> (i32, i32) {
    %c0_i32 = arith.constant 0 : i32
    %c0_i32_0 = arith.constant 0 : i32
    %c0_i32_1 = arith.constant 0 : i32
    return %c0_i32, %c0_i32_0 : i32, i32
  }
  func.func @transform_3(%arg0: i32) -> (i32, i32) {
    %c0_i32 = arith.constant 0 : i32
    %c0_i32_0 = arith.constant 0 : i32
    %c0_i32_1 = arith.constant 0 : i32
    return %c0_i32, %c0_i32_0 : i32, i32
  }
  func.func @transform_4(%arg0: i32) -> (i32, i32) {
    %c0_i32 = arith.constant 0 : i32
    %c0_i32_0 = arith.constant 0 : i32
    %c0_i32_1 = arith.constant 0 : i32
    return %c0_i32, %c0_i32_0 : i32, i32
  }
  func.func @transform_5(%arg0: i32) -> (i32, i32) {
    %c0_i32 = arith.constant 0 : i32
    %c0_i32_0 = arith.constant 0 : i32
    %c0_i32_1 = arith.constant 0 : i32
    return %c0_i32, %c0_i32_0 : i32, i32
  }
  func.func @transform_6(%arg0: i32) -> (i32, i32) {
    %c0_i32 = arith.constant 0 : i32
    %c0_i32_0 = arith.constant 0 : i32
    %c0_i32_1 = arith.constant 0 : i32
    return %c0_i32, %c0_i32_0 : i32, i32
  }
  func.func @transform_7(%arg0: i32) -> (i32, i32, i32) {
    %c0_i32 = arith.constant 0 : i32
    %c0_i32_0 = arith.constant 0 : i32
    %c0_i32_1 = arith.constant 0 : i32
    return %arg0, %c0_i32, %c0_i32_0 : i32, i32, i32
  }
  func.func @transform_8(%arg0: i32) -> (i32, i32, i32) {
    %c0_i32 = arith.constant 0 : i32
    %c0_i32_0 = arith.constant 0 : i32
    %c0_i32_1 = arith.constant 0 : i32
    return %arg0, %c0_i32, %c0_i32_0 : i32, i32, i32
  }
}

</mosaic_0001>

<llo_original>
// kernel: tpu_custom_call.1
$region0: #{tpu_custom_call.1}
  #allocation0 [shape = 'u32[]', space=smem, size = 0x4, offset = 0x4, fixed_abs, tag = 'smem constant byte address 0x4 - core index']
  #allocation1 [shape = 'u32[144,128]{1,0:T(1,128)}', space=vmem, size = 0x12000, scoped, tag = 'internal scratch']
  %s0 = inlined_call_operand.hbm [shape: f32[2,128,128], index: 0, kind: input, shape index: {}]
  %s1 = inlined_call_operand.hbm [shape: bf16[128,128], index: 1, kind: input, shape index: {}]
  %s2 = inlined_call_operand.vmem [shape: f32[1,128], index: 2, kind: input, shape index: {}]
  %s3 = inlined_call_operand.hbm [shape: bf16[128,128], index: 3, kind: input, shape index: {}]
  %s4 = inlined_call_operand.vmem [shape: f32[1,128], index: 4, kind: input, shape index: {}]
  %s5 = inlined_call_operand.hbm [shape: bf16[128,128], index: 5, kind: input, shape index: {}]
  %s6 = inlined_call_operand.vmem [shape: f32[1,128], index: 6, kind: input, shape index: {}]
  %s7 = inlined_call_operand.hbm [shape: bf16[2,128,128], index: 7, kind: output, shape index: {0}]
  %s8 = inlined_call_operand.hbm [shape: bf16[2,128,128], index: 8, kind: output, shape index: {1}]
  %9 = xla_tuple %s7, %s8
  %s10 = sld [smem:[#allocation0]]
  $region85: #{tpu_custom_call.1} parent=0
    _
  %s12 = ssub.s32 1, %s10
  %s13 = scalar_select 0, %s12, %s10
  $region1: #{tpu_custom_call.1} parent=0
    #allocation2 [shape = 'u8[131072]{0}', space=vmem, size = 0x20000, scoped, tag = 'input window, operand 0']
    #allocation3 [shape = 's32[2]{0}', space=sflag, size = 0x8, scoped, tag = 'scoped memory for tpu_custom_call.1']
    #allocation4 [shape = 's32[2]{0}', space=sflag, size = 0x8, scoped, tag = 'scoped memory for tpu_custom_call.1']
    #allocation5 [shape = 'u8[32768]{0}', space=vmem, size = 0x8000, scoped, tag = 'input window, operand 1, single buffered']
    #allocation6 [shape = 's32[1]{0}', space=sflag, size = 0x4, scoped, tag = 'scoped memory for tpu_custom_call.1']
    #allocation7 [shape = 'u8[32768]{0}', space=vmem, size = 0x8000, scoped, tag = 'input window, operand 3, single buffered']
    #allocation8 [shape = 'u8[32768]{0}', space=vmem, size = 0x8000, scoped, tag = 'input window, operand 5, single buffered']
    #allocation9 [shape = 's32[1]{0}', space=sflag, size = 0x4, scoped, tag = 'scoped memory for tpu_custom_call.1']
    #allocation10 [shape = 'u8[65536]{0}', space=vmem, size = 0x10000, scoped, tag = 'output window, operand 0']
    #allocation11 [shape = 'u8[65536]{0}', space=vmem, size = 0x10000, scoped, tag = 'output window, operand 1']
    #allocation12 [shape = 's32[2]{0}', space=sflag, size = 0x8, scoped, tag = 'scoped memory for tpu_custom_call.1']
    %14 = vsyncpa [#allocation3], 0
    %s15 = scalar_lea.sflag [#allocation3], 1
    %16 = vsyncpa %s15, 0
    %17 = vsyncpa [#allocation6], 0
    %18 = vsyncpa [#allocation9], 0
    %19 = vsyncpa [#allocation4], 0
    %s20 = scalar_lea.sflag [#allocation4], 1
    %21 = vsyncpa %s20, 0
    %22 = vsyncpa [#allocation12], 0
    %s23 = scalar_lea.sflag [#allocation12], 1
    %24 = vsyncpa %s23, 0
    loop: start=0, step=1, limit=4
    $region2: #{tpu_custom_call.1} parent=1 // loop_pre_header
      _
    $region3: #{tpu_custom_call.1} parent=1 // loop_header
      %s26 = sphi 0, %s30
      %p27 = scmp.ge.s32.totalorder %s26, 4
      %s36 = sphi 0, %s38
      %s39 = sphi 0, %s36
      %s40 = sphi 0, %s39
      %s56 = sphi 0, %s40
      %s60 = sphi 0, %s60
      %s62 = sphi 0, %s60
      %s63 = sphi 0, %s62
      %s77 = sphi 0, %s63
      %s81 = sphi 0, %s81
      %s83 = sphi 0, %s81
      %s84 = sphi 0, %s83
      %s98 = sphi 0, %s84
      %s102 = sphi 0, %s102
      %s104 = sphi 0, %s102
      %s105 = sphi 0, %s104
      %s119 = sphi 0, %s105
      %s123 = sphi 0, %s123
      %s125 = sphi 0, %s123
      %s126 = sphi 0, %s125
      %s140 = sphi 0, %s126
      %s144 = sphi 0, %s144
      %s146 = sphi 0, %s144
      %s147 = sphi 0, %s146
      %s161 = sphi 0, %s147
      %s165 = sphi 0, %s165
      %s167 = sphi 0, %s165
      %s168 = sphi 0, %s167
      %s182 = sphi 0, %s168
      %s188 = sphi 0, %s190
      %s191 = sphi 0, %s188
      %s192 = sphi 0, %s191
      %s208 = sphi 0, %s192
      %s214 = sphi 0, %s216
      %s217 = sphi 0, %s214
      %s218 = sphi 0, %s217
      %s234 = sphi 0, %s218
    $region4: #{tpu_custom_call.1} parent=1 // loop_header_branch
      %29 = sbr.rel (%p27) target = $region8
    $region5: #{tpu_custom_call.1} parent=1 // loop_body
      %s31 = ssub.s32 %s26, 1
      %s32 = ssub.s32 %s26, 2
      %s33 = sadd.s32 %s26, 1
      %s34 = ssub.s32 %s26, %s33
      %p35 = scmp.eq.s32.totalorder %s34, 0
      %s37 = sadd.s32 %s36, 1
      %s38 = scalar_select %p35, %s36, %s37
      %p41 = pneg %p35
      %p42 = scmp.eq.s32.totalorder %s26, 1
      %p43 = por %p41, %p42
      %p44 = scmp.ne.s32.totalorder %s36, %s39
      %p45 = scmp.eq.s32.totalorder %s26, 0
      %p46 = por %p44, %p45
      %p47 = scmp.ne.s32.totalorder %s36, %s39
      %p48 = scmp.eq.s32.totalorder %s31, 1
      %p49 = por %p47, %p48
      %p50 = scmp.ne.s32.totalorder %s39, %s40
      %p51 = scmp.eq.s32.totalorder %s31, 0
      %p52 = por %p50, %p51
      %p53 = scmp.ne.s32.totalorder %s39, %s40
      %p54 = scmp.eq.s32.totalorder %s32, 1
      %p55 = por %p53, %p54
      %p57 = scmp.ne.s32.totalorder %s40, %s56
      %p58 = scmp.eq.s32.totalorder %s32, 0
      %p59 = por %p57, %p58
      %s61 = sadd.s32 %s60, 1
      %p64 = scmp.eq.s32.totalorder %s26, 1
      %p65 = scmp.ne.s32.totalorder %s60, %s62
      %p66 = scmp.eq.s32.totalorder %s26, 0
      %p67 = por %p65, %p66
      %p68 = scmp.ne.s32.totalorder %s60, %s62
      %p69 = scmp.eq.s32.totalorder %s31, 1
      %p70 = por %p68, %p69
      %p71 = scmp.ne.s32.totalorder %s62, %s63
      %p72 = scmp.eq.s32.totalorder %s31, 0
      %p73 = por %p71, %p72
      %p74 = scmp.ne.s32.totalorder %s62, %s63
      %p75 = scmp.eq.s32.totalorder %s32, 1
      %p76 = por %p74, %p75
      %p78 = scmp.ne.s32.totalorder %s63, %s77
      %p79 = scmp.eq.s32.totalorder %s32, 0
      %p80 = por %p78, %p79
      %s82 = sadd.s32 %s81, 1
      %p85 = scmp.eq.s32.totalorder %s26, 1
      %p86 = scmp.ne.s32.totalorder %s81, %s83
      %p87 = scmp.eq.s32.totalorder %s26, 0
      %p88 = por %p86, %p87
      %p89 = scmp.ne.s32.totalorder %s81, %s83
      %p90 = scmp.eq.s32.totalorder %s31, 1
      %p91 = por %p89, %p90
      %p92 = scmp.ne.s32.totalorder %s83, %s84
      %p93 = scmp.eq.s32.totalorder %s31, 0
      %p94 = por %p92, %p93
      %p95 = scmp.ne.s32.totalorder %s83, %s84
      %p96 = scmp.eq.s32.totalorder %s32, 1
      %p97 = por %p95, %p96
      %p99 = scmp.ne.s32.totalorder %s84, %s98
      %p100 = scmp.eq.s32.totalorder %s32, 0
      %p101 = por %p99, %p100
      %s103 = sadd.s32 %s102, 1
      %p106 = scmp.eq.s32.totalorder %s26, 1
      %p107 = scmp.ne.s32.totalorder %s102, %s104
      %p108 = scmp.eq.s32.totalorder %s26, 0
      %p109 = por %p107, %p108
      %p110 = scmp.ne.s32.totalorder %s102, %s104
      %p111 = scmp.eq.s32.totalorder %s31, 1
      %p112 = por %p110, %p111
      %p113 = scmp.ne.s32.totalorder %s104, %s105
      %p114 = scmp.eq.s32.totalorder %s31, 0
      %p115 = por %p113, %p114
      %p116 = scmp.ne.s32.totalorder %s104, %s105
      %p117 = scmp.eq.s32.totalorder %s32, 1
      %p118 = por %p116, %p117
      %p120 = scmp.ne.s32.totalorder %s105, %s119
      %p121 = scmp.eq.s32.totalorder %s32, 0
      %p122 = por %p120, %p121
      %s124 = sadd.s32 %s123, 1
      %p127 = scmp.eq.s32.totalorder %s26, 1
      %p128 = scmp.ne.s32.totalorder %s123, %s125
      %p129 = scmp.eq.s32.totalorder %s26, 0
      %p130 = por %p128, %p129
      %p131 = scmp.ne.s32.totalorder %s123, %s125
      %p132 = scmp.eq.s32.totalorder %s31, 1
      %p133 = por %p131, %p132
      %p134 = scmp.ne.s32.totalorder %s125, %s126
      %p135 = scmp.eq.s32.totalorder %s31, 0
      %p136 = por %p134, %p135
      %p137 = scmp.ne.s32.totalorder %s125, %s126
      %p138 = scmp.eq.s32.totalorder %s32, 1
      %p139 = por %p137, %p138
      %p141 = scmp.ne.s32.totalorder %s126, %s140
      %p142 = scmp.eq.s32.totalorder %s32, 0
      %p143 = por %p141, %p142
      %s145 = sadd.s32 %s144, 1
      %p148 = scmp.eq.s32.totalorder %s26, 1
      %p149 = scmp.ne.s32.totalorder %s144, %s146
      %p150 = scmp.eq.s32.totalorder %s26, 0
      %p151 = por %p149, %p150
      %p152 = scmp.ne.s32.totalorder %s144, %s146
      %p153 = scmp.eq.s32.totalorder %s31, 1
      %p154 = por %p152, %p153
      %p155 = scmp.ne.s32.totalorder %s146, %s147
      %p156 = scmp.eq.s32.totalorder %s31, 0
      %p157 = por %p155, %p156
      %p158 = scmp.ne.s32.totalorder %s146, %s147
      %p159 = scmp.eq.s32.totalorder %s32, 1
      %p160 = por %p158, %p159
      %p162 = scmp.ne.s32.totalorder %s147, %s161
      %p163 = scmp.eq.s32.totalorder %s32, 0
      %p164 = por %p162, %p163
      %s166 = sadd.s32 %s165, 1
      %p169 = scmp.eq.s32.totalorder %s26, 1
      %p170 = scmp.ne.s32.totalorder %s165, %s167
      %p171 = scmp.eq.s32.totalorder %s26, 0
      %p172 = por %p170, %p171
      %p173 = scmp.ne.s32.totalorder %s165, %s167
      %p174 = scmp.eq.s32.totalorder %s31, 1
      %p175 = por %p173, %p174
      %p176 = scmp.ne.s32.totalorder %s167, %s168
      %p177 = scmp.eq.s32.totalorder %s31, 0
      %p178 = por %p176, %p177
      %p179 = scmp.ne.s32.totalorder %s167, %s168
      %p180 = scmp.eq.s32.totalorder %s32, 1
      %p181 = por %p179, %p180
      %p183 = scmp.ne.s32.totalorder %s168, %s182
      %p184 = scmp.eq.s32.totalorder %s32, 0
      %p185 = por %p183, %p184
      %s186 = ssub.s32 %s26, %s33
      %p187 = scmp.eq.s32.totalorder %s186, 0
      %s189 = sadd.s32 %s188, 1
      %s190 = scalar_select %p187, %s188, %s189
      %p193 = pneg %p187
      %p194 = scmp.eq.s32.totalorder %s26, 1
      %p195 = por %p193, %p194
      %p196 = scmp.ne.s32.totalorder %s188, %s191
      %p197 = scmp.eq.s32.totalorder %s26, 0
      %p198 = por %p196, %p197
      %p199 = scmp.ne.s32.totalorder %s188, %s191
      %p200 = scmp.eq.s32.totalorder %s31, 1
      %p201 = por %p199, %p200
      %p202 = scmp.ne.s32.totalorder %s191, %s192
      %p203 = scmp.eq.s32.totalorder %s31, 0
      %p204 = por %p202, %p203
      %p205 = scmp.ne.s32.totalorder %s191, %s192
      %p206 = scmp.eq.s32.totalorder %s32, 1
      %p207 = por %p205, %p206
      %p209 = scmp.ne.s32.totalorder %s192, %s208
      %p210 = scmp.eq.s32.totalorder %s32, 0
      %p211 = por %p209, %p210
      %s212 = ssub.s32 %s26, %s33
      %p213 = scmp.eq.s32.totalorder %s212, 0
      %s215 = sadd.s32 %s214, 1
      %s216 = scalar_select %p213, %s214, %s215
      %p219 = pneg %p213
      %p220 = scmp.eq.s32.totalorder %s26, 1
      %p221 = por %p219, %p220
      %p222 = scmp.ne.s32.totalorder %s214, %s217
      %p223 = scmp.eq.s32.totalorder %s26, 0
      %p224 = por %p222, %p223
      %p225 = scmp.ne.s32.totalorder %s214, %s217
      %p226 = scmp.eq.s32.totalorder %s31, 1
      %p227 = por %p225, %p226
      %p228 = scmp.ne.s32.totalorder %s217, %s218
      %p229 = scmp.eq.s32.totalorder %s31, 0
      %p230 = por %p228, %p229
      %p231 = scmp.ne.s32.totalorder %s217, %s218
      %p232 = scmp.eq.s32.totalorder %s32, 1
      %p233 = por %p231, %p232
      %p235 = scmp.ne.s32.totalorder %s218, %s234
      %p236 = scmp.eq.s32.totalorder %s32, 0
      %p237 = por %p235, %p236
      %p238 = scmp.le.s32.totalorder 1, %s26
      %p239 = scmp.lt.s32.totalorder %s26, 3
      %p240 = pnand %p238, %p239
      %p241 = pneg %p240
      // Predicated region
      $region9: #{tpu_custom_call.1} parent=5 // pred_check
        _
      $region10: #{tpu_custom_call.1} parent=5 // pred_check_branch
        %243 = sbr.rel (%p240) target = $region12
      $region11: #{tpu_custom_call.1} parent=5 // pred_region
        %s244 = ssub.s32 %s26, 1
        // Predicated region
        $region13: #{tpu_custom_call.1} parent=11 // pred_check
          %p245 = pneg %p73
        $region14: #{tpu_custom_call.1} parent=11 // pred_check_branch
          %247 = sbr.rel (%p245) target = $region16
        $region15: #{tpu_custom_call.1} parent=11 // pred_region
          %s249 = ssub.s32 1024, 1024
          %250 = vsyncadd [#allocation6], %s249
          %s251 = sshll.u32 [#allocation5], 4
          %s252 = int_to_ptr.vmem [resolvable:$true] %s251
          %257 = dma.hbm_to_vmem [thread:$0]  %s1, 1024, %s252, [#allocation6], 64, 64, 4
        $region16: #{tpu_custom_call.1} parent=11 // pred_fallthru
          _
        // Predicated region
        $region17: #{tpu_custom_call.1} parent=11 // pred_check
          %p258 = pneg %p94
        $region18: #{tpu_custom_call.1} parent=11 // pred_check_branch
          %260 = sbr.rel (%p258) target = $region20
        $region19: #{tpu_custom_call.1} parent=11 // pred_region
          _
        $region20: #{tpu_custom_call.1} parent=11 // pred_fallthru
          _
        // Predicated region
        $region21: #{tpu_custom_call.1} parent=11 // pred_check
          %p261 = pneg %p115
        $region22: #{tpu_custom_call.1} parent=11 // pred_check_branch
          %263 = sbr.rel (%p261) target = $region24
        $region23: #{tpu_custom_call.1} parent=11 // pred_region
          %s265 = ssub.s32 1024, 1024
          %266 = vsyncadd [#allocation6], %s265
          %s267 = sshll.u32 [#allocation7], 4
          %s268 = int_to_ptr.vmem [resolvable:$true] %s267
          %273 = dma.hbm_to_vmem [thread:$0]  %s3, 1024, %s268, [#allocation6], 64, 64, 4
        $region24: #{tpu_custom_call.1} parent=11 // pred_fallthru
          _
        // Predicated region
        $region25: #{tpu_custom_call.1} parent=11 // pred_check
          %p274 = pneg %p136
        $region26: #{tpu_custom_call.1} parent=11 // pred_check_branch
          %276 = sbr.rel (%p274) target = $region28
        $region27: #{tpu_custom_call.1} parent=11 // pred_region
          _
        $region28: #{tpu_custom_call.1} parent=11 // pred_fallthru
          _
        // Predicated region
        $region29: #{tpu_custom_call.1} parent=11 // pred_check
          %p277 = pneg %p157
        $region30: #{tpu_custom_call.1} parent=11 // pred_check_branch
          %279 = sbr.rel (%p277) target = $region32
        $region31: #{tpu_custom_call.1} parent=11 // pred_region
          %s281 = ssub.s32 1024, 1024
          %282 = vsyncadd [#allocation9], %s281
          %s283 = sshll.u32 [#allocation8], 4
          %s284 = int_to_ptr.vmem [resolvable:$true] %s283
          %289 = dma.hbm_to_vmem [thread:$0]  %s5, 1024, %s284, [#allocation9], 64, 64, 4
        $region32: #{tpu_custom_call.1} parent=11 // pred_fallthru
          _
        // Predicated region
        $region33: #{tpu_custom_call.1} parent=11 // pred_check
          %p290 = pneg %p178
        $region34: #{tpu_custom_call.1} parent=11 // pred_check_branch
          %292 = sbr.rel (%p290) target = $region36
        $region35: #{tpu_custom_call.1} parent=11 // pred_region
          _
        $region36: #{tpu_custom_call.1} parent=11 // pred_fallthru
          _
      $region12: #{tpu_custom_call.1} parent=5 // pred_fallthru
        _
      %p293 = scmp.lt.s32.totalorder %s26, 2
      // Predicated region
      $region37: #{tpu_custom_call.1} parent=5 // pred_check
        %p294 = pneg %p293
      $region38: #{tpu_custom_call.1} parent=5 // pred_check_branch
        %296 = sbr.rel (%p294) target = $region40
      $region39: #{tpu_custom_call.1} parent=5 // pred_region
        // Predicated region
        $region41: #{tpu_custom_call.1} parent=39 // pred_check
          %p297 = pneg %p46
        $region42: #{tpu_custom_call.1} parent=39 // pred_check_branch
          %299 = sbr.rel (%p297) target = $region44
        $region43: #{tpu_custom_call.1} parent=39 // pred_region
          %s300 = sand.u32 %s36, 1
          %s301 = scalar_lea.sflag [#allocation3], %s300
          %s302 = sand.u32 %s36, 1
          %s303 = smul.addr %s302, 128
          %s304 = scalar_lea.vmem [#allocation2], %s303
          %s306 = ssub.s32 2048, 2048
          %307 = vsyncadd %s301, %s306
          %s308 = smul.addr %s26, 16
          %s309 = smul.addr %s308, 128
          %s310 = scalar_lea.hbm %s0, %s309
          %s311 = sshll.u32 %s304, 4
          %s312 = int_to_ptr.vmem [resolvable:$true] %s311
          %317 = dma.hbm_to_vmem [thread:$0]  %s310, 2048, %s312, %s301, 128, 128, 8
        $region44: #{tpu_custom_call.1} parent=39 // pred_fallthru
          _
      $region40: #{tpu_custom_call.1} parent=5 // pred_fallthru
        _
      %p318 = scmp.le.s32.totalorder 1, %s26
      %p319 = scmp.lt.s32.totalorder %s26, 3
      %p320 = pnand %p318, %p319
      %p321 = pneg %p320
      // Predicated region
      $region45: #{tpu_custom_call.1} parent=5 // pred_check
        _
      $region46: #{tpu_custom_call.1} parent=5 // pred_check_branch
        %323 = sbr.rel (%p320) target = $region48
      $region47: #{tpu_custom_call.1} parent=5 // pred_region
        %s324 = ssub.s32 %s26, 1
        %s325 = sand.u32 %s39, 1
        %s326 = scalar_lea.sflag [#allocation3], %s325
        %s327 = sand.u32 %s39, 1
        %s328 = smul.addr %s327, 128
        %s329 = scalar_lea.vmem [#allocation2], %s328
        // Predicated region
        $region49: #{tpu_custom_call.1} parent=47 // pred_check
          %p330 = pneg %p52
        $region50: #{tpu_custom_call.1} parent=47 // pred_check_branch
          %332 = sbr.rel (%p330) target = $region52
        $region51: #{tpu_custom_call.1} parent=47 // pred_region
          %333 = dma.done %s326, 2048
        $region52: #{tpu_custom_call.1} parent=47 // pred_fallthru
          _
        // Predicated region
        $region53: #{tpu_custom_call.1} parent=47 // pred_check
          %p334 = pneg %p73
        $region54: #{tpu_custom_call.1} parent=47 // pred_check_branch
          %336 = sbr.rel (%p334) target = $region56
        $region55: #{tpu_custom_call.1} parent=47 // pred_region
          %337 = dma.done [#allocation6], 1024
        $region56: #{tpu_custom_call.1} parent=47 // pred_fallthru
          _
        // Predicated region
        $region57: #{tpu_custom_call.1} parent=47 // pred_check
          %p338 = pneg %p115
        $region58: #{tpu_custom_call.1} parent=47 // pred_check_branch
          %340 = sbr.rel (%p338) target = $region60
        $region59: #{tpu_custom_call.1} parent=47 // pred_region
          %341 = dma.done [#allocation6], 1024
        $region60: #{tpu_custom_call.1} parent=47 // pred_fallthru
          _
        // Predicated region
        $region61: #{tpu_custom_call.1} parent=47 // pred_check
          %p342 = pneg %p157
        $region62: #{tpu_custom_call.1} parent=47 // pred_check_branch
          %344 = sbr.rel (%p342) target = $region64
        $region63: #{tpu_custom_call.1} parent=47 // pred_region
          %345 = dma.done [#allocation9], 1024
        $region64: #{tpu_custom_call.1} parent=47 // pred_fallthru
          _
        %s346 = sand.u32 %s39, 1
        %s347 = scalar_lea.sflag [#allocation3], %s346
        %s348 = sand.u32 %s39, 1
        %s349 = smul.addr %s348, 128
        %s350 = scalar_lea.vmem [#allocation2], %s349
        %p351 = pneg %p52
        %p352 = pneg %p49
        %p353 = pneg %p73
        %p354 = pneg %p70
        %p355 = pneg %p94
        %p356 = pneg %p91
        %p357 = pneg %p115
        %p358 = pneg %p112
        %p359 = pneg %p136
        %p360 = pneg %p133
        %p361 = pneg %p157
        %p362 = pneg %p154
        %p363 = pneg %p178
        %p364 = pneg %p175
        %p365 = pneg %p204
        %p366 = pneg %p201
        %s367 = sand.u32 %s191, 1
        %s368 = scalar_lea.sflag [#allocation4], %s367
        %s369 = sand.u32 %s191, 1
        %s370 = smul.addr %s369, 64
        %s371 = scalar_lea.vmem [#allocation10], %s370
        %p372 = pneg %p230
        %p373 = pneg %p227
        %s374 = sand.u32 %s217, 1
        %s375 = scalar_lea.sflag [#allocation12], %s374
        %s376 = sand.u32 %s217, 1
        %s377 = smul.addr %s376, 64
        %s378 = scalar_lea.vmem [#allocation11], %s377
        %v380 = vld [vmem:[%s329] sm:$0xff]
        %v381 = vld [vmem:[%s329 + $0x8] sm:$0xff]
        %v382 = vld [vmem:[%s329 + $0x10] sm:$0xff]
        %v383 = vld [vmem:[%s329 + $0x18] sm:$0xff]
        %v384 = vld [vmem:[%s329 + $0x20] sm:$0xff]
        %v385 = vld [vmem:[%s329 + $0x28] sm:$0xff]
        %v386 = vld [vmem:[%s329 + $0x30] sm:$0xff]
        %v387 = vld [vmem:[%s329 + $0x38] sm:$0xff]
        %v388 = vld [vmem:[%s329 + $0x40] sm:$0xff]
        %v389 = vld [vmem:[%s329 + $0x48] sm:$0xff]
        %v390 = vld [vmem:[%s329 + $0x50] sm:$0xff]
        %v391 = vld [vmem:[%s329 + $0x58] sm:$0xff]
        %v392 = vld [vmem:[%s329 + $0x60] sm:$0xff]
        %v393 = vld [vmem:[%s329 + $0x68] sm:$0xff]
        %v394 = vld [vmem:[%s329 + $0x70] sm:$0xff]
        %v395 = vld [vmem:[%s329 + $0x78] sm:$0xff]
        %v396 = vpack.c.bf16 %v381, %v380
        %v397 = vpack.c.bf16 %v383, %v382
        %v398 = vpack.c.bf16 %v385, %v384
        %v399 = vpack.c.bf16 %v387, %v386
        %v400 = vpack.c.bf16 %v389, %v388
        %v401 = vpack.c.bf16 %v391, %v390
        %v402 = vpack.c.bf16 %v393, %v392
        %v403 = vpack.c.bf16 %v395, %v394
        %v404 = vld [vmem:[#allocation5] sm:$0xf]
        %v405 = vld [vmem:[#allocation5 + $0x4] sm:$0xf]
        %v406 = vld [vmem:[#allocation5 + $0x8] sm:$0xf]
        %v407 = vld [vmem:[#allocation5 + $0xc] sm:$0xf]
        %v408 = vld [vmem:[#allocation5 + $0x10] sm:$0xf]
        %v409 = vld [vmem:[#allocation5 + $0x14] sm:$0xf]
        %v410 = vld [vmem:[#allocation5 + $0x18] sm:$0xf]
        %v411 = vld [vmem:[#allocation5 + $0x1c] sm:$0xf]
        %v412 = vld [vmem:[#allocation5 + $0x20] sm:$0xf]
        %v413 = vld [vmem:[#allocation5 + $0x24] sm:$0xf]
        %v414 = vld [vmem:[#allocation5 + $0x28] sm:$0xf]
        %v415 = vld [vmem:[#allocation5 + $0x2c] sm:$0xf]
        %v416 = vld [vmem:[#allocation5 + $0x30] sm:$0xf]
        %v417 = vld [vmem:[#allocation5 + $0x34] sm:$0xf]
        %v418 = vld [vmem:[#allocation5 + $0x38] sm:$0xf]
        %v419 = vld [vmem:[#allocation5 + $0x3c] sm:$0xf]
        %v420 = vld [vmem:[%s2] sm:$0x1]
        %v422 = vlaneseq
        %v423 = vshrl.u32 %v422, 7
        %v424 = vsub.s32 0, %v423
        %v425 = vrot.slane %v420, %v424
        %v443 = vunpack.c.l.b16 %v404
        %v444 = vunpack.c.l.b16 %v405
        %v445 = vunpack.c.l.b16 %v406
        %v446 = vunpack.c.l.b16 %v407
        %v447 = vunpack.c.l.b16 %v408
        %v448 = vunpack.c.l.b16 %v409
        %v449 = vunpack.c.l.b16 %v410
        %v450 = vunpack.c.l.b16 %v411
        %v451 = vunpack.c.l.b16 %v412
        %v452 = vunpack.c.l.b16 %v413
        %v453 = vunpack.c.l.b16 %v414
        %v454 = vunpack.c.l.b16 %v415
        %v455 = vunpack.c.l.b16 %v416
        %v456 = vunpack.c.l.b16 %v417
        %v457 = vunpack.c.l.b16 %v418
        %v458 = vunpack.c.l.b16 %v419
        %v459 = vpack.c.b16 %v444, %v443
        %v460 = vpack.c.b16 %v446, %v445
        %v461 = vpack.c.b16 %v448, %v447
        %v462 = vpack.c.b16 %v450, %v449
        %v463 = vpack.c.b16 %v452, %v451
        %v464 = vpack.c.b16 %v454, %v453
        %v465 = vpack.c.b16 %v456, %v455
        %v466 = vpack.c.b16 %v458, %v457
        %475 = vmatprep.subr.bf16.mxu0 0
        %476 = vmatpush1.bf16.msra.mxu0 %v466
        %477 = vmatprep.subr.bf16.mxu0 0
        %478 = vmatpush1.bf16.msra.mxu0 %v465
        %479 = vmatprep.subr.bf16.mxu0 0
        %480 = vmatpush1.bf16.msra.mxu0 %v464
        %481 = vmatprep.subr.bf16.mxu0 0
        %482 = vmatpush1.bf16.msra.mxu0 %v463
        %483 = vmatprep.subr.bf16.mxu0 0
        %484 = vmatpush1.bf16.msra.mxu0 %v462
        %485 = vmatprep.subr.bf16.mxu0 0
        %486 = vmatpush1.bf16.msra.mxu0 %v461
        %487 = vmatprep.subr.bf16.mxu0 0
        %488 = vmatpush1.bf16.msra.mxu0 %v460
        %489 = vmatprep.subr.bf16.mxu0 0
        %490 = vmatpush1.bf16.msra.mxu0 %v459
        %491 = vmatprep.subr.bf16.mxu0 0
        %492 = vmatpush2.bf16.msra.mxu0 0
        %493 = vmatprep.subr.bf16.mxu0 0
        %494 = vmatpush2.bf16.msra.mxu0 0
        %495 = vmatprep.subr.bf16.mxu0 0
        %496 = vmatpush2.bf16.msra.mxu0 0
        %497 = vmatprep.subr.bf16.mxu0 0
        %498 = vmatpush2.bf16.msra.mxu0 0
        %499 = vmatprep.subr.bf16.mxu0 0
        %500 = vmatpush2.bf16.msra.mxu0 0
        %501 = vmatprep.subr.bf16.mxu0 0
        %502 = vmatpush2.bf16.msra.mxu0 0
        %503 = vmatprep.subr.bf16.mxu0 0
        %504 = vmatpush2.bf16.msra.mxu0 0
        %505 = vmatprep.subr.bf16.mxu0 0
        %506 = vmatpush2.bf16.msra.mxu0 0
        %507 = vmatprep.mubr.bf16.mxu0 0
        %508 = vmatmul.mubr.bf16.gmra.mxu0 %v396
        %v509 = vpop.f32.mrf.mxu0
        %v510 = vadd.f32 %v425, %v509
        %v511 = vpop.f32.mrf.mxu0
        %v512 = vpop.f32.mrf.mxu0
        %v513 = vadd.f32 %v425, %v512
        %v514 = vpop.f32.mrf.mxu0
        %515 = vmatprep.mubr.bf16.mxu0 0
        %516 = vmatmul.mubr.bf16.gmra.mxu0 %v397
        %v517 = vpop.f32.mrf.mxu0
        %v518 = vadd.f32 %v425, %v517
        %v519 = vpop.f32.mrf.mxu0
        %v520 = vpop.f32.mrf.mxu0
        %v521 = vadd.f32 %v425, %v520
        %v522 = vpop.f32.mrf.mxu0
        %523 = vmatprep.mubr.bf16.mxu0 0
        %524 = vmatmul.mubr.bf16.gmra.mxu0 %v398
        %v525 = vpop.f32.mrf.mxu0
        %v526 = vadd.f32 %v425, %v525
        %v527 = vpop.f32.mrf.mxu0
        %v528 = vpop.f32.mrf.mxu0
        %v529 = vadd.f32 %v425, %v528
        %v530 = vpop.f32.mrf.mxu0
        %531 = vmatprep.mubr.bf16.mxu0 0
        %532 = vmatmul.mubr.bf16.gmra.mxu0 %v399
        %v533 = vpop.f32.mrf.mxu0
        %v534 = vadd.f32 %v425, %v533
        %v535 = vpop.f32.mrf.mxu0
        %v536 = vpop.f32.mrf.mxu0
        %v537 = vadd.f32 %v425, %v536
        %v538 = vpop.f32.mrf.mxu0
        %539 = vmatprep.mubr.bf16.mxu0 0
        %540 = vmatmul.mubr.bf16.gmra.mxu0 %v400
        %v541 = vpop.f32.mrf.mxu0
        %v542 = vadd.f32 %v425, %v541
        %v543 = vpop.f32.mrf.mxu0
        %v544 = vpop.f32.mrf.mxu0
        %v545 = vadd.f32 %v425, %v544
        %v546 = vpop.f32.mrf.mxu0
        %547 = vmatprep.mubr.bf16.mxu0 0
        %548 = vmatmul.mubr.bf16.gmra.mxu0 %v401
        %v549 = vpop.f32.mrf.mxu0
        %v550 = vadd.f32 %v425, %v549
        %v551 = vpop.f32.mrf.mxu0
        %v552 = vpop.f32.mrf.mxu0
        %v553 = vadd.f32 %v425, %v552
        %v554 = vpop.f32.mrf.mxu0
        %555 = vmatprep.mubr.bf16.mxu0 0
        %556 = vmatmul.mubr.bf16.gmra.mxu0 %v402
        %v557 = vpop.f32.mrf.mxu0
        %v558 = vadd.f32 %v425, %v557
        %v559 = vpop.f32.mrf.mxu0
        %v560 = vpop.f32.mrf.mxu0
        %v561 = vadd.f32 %v425, %v560
        %v562 = vpop.f32.mrf.mxu0
        %563 = vmatprep.mubr.bf16.mxu0 0
        %564 = vmatmul.mubr.bf16.gmra.mxu0 %v403
        %v565 = vpop.f32.mrf.mxu0
        %v566 = vadd.f32 %v425, %v565
        %v567 = vpop.f32.mrf.mxu0
        %v568 = vpop.f32.mrf.mxu0
        %v569 = vadd.f32 %v425, %v568
        %v570 = vpop.f32.mrf.mxu0
        %571 = vdwg.mxu0
        %v572 = vmax.f32 %v510, 0.0
        %v573 = vmax.f32 %v513, 0.0
        %v574 = vmax.f32 %v518, 0.0
        %v575 = vmax.f32 %v521, 0.0
        %v576 = vmax.f32 %v526, 0.0
        %v577 = vmax.f32 %v529, 0.0
        %v578 = vmax.f32 %v534, 0.0
        %v579 = vmax.f32 %v537, 0.0
        %v580 = vmax.f32 %v542, 0.0
        %v581 = vmax.f32 %v545, 0.0
        %v582 = vmax.f32 %v550, 0.0
        %v583 = vmax.f32 %v553, 0.0
        %v584 = vmax.f32 %v558, 0.0
        %v585 = vmax.f32 %v561, 0.0
        %v586 = vmax.f32 %v566, 0.0
        %v587 = vmax.f32 %v569, 0.0
        %v588 = vpack.c.bf16 %v573, %v572
        %v589 = vpack.c.bf16 %v575, %v574
        %v590 = vpack.c.bf16 %v577, %v576
        %v591 = vpack.c.bf16 %v579, %v578
        %v592 = vpack.c.bf16 %v581, %v580
        %v593 = vpack.c.bf16 %v583, %v582
        %v594 = vpack.c.bf16 %v585, %v584
        %v595 = vpack.c.bf16 %v587, %v586
        %v596 = vld [vmem:[#allocation7] sm:$0xf]
        %v597 = vld [vmem:[#allocation7 + $0x4] sm:$0xf]
        %v598 = vld [vmem:[#allocation7 + $0x8] sm:$0xf]
        %v599 = vld [vmem:[#allocation7 + $0xc] sm:$0xf]
        %v600 = vld [vmem:[#allocation7 + $0x10] sm:$0xf]
        %v601 = vld [vmem:[#allocation7 + $0x14] sm:$0xf]
        %v602 = vld [vmem:[#allocation7 + $0x18] sm:$0xf]
        %v603 = vld [vmem:[#allocation7 + $0x1c] sm:$0xf]
        %v604 = vld [vmem:[#allocation7 + $0x20] sm:$0xf]
        %v605 = vld [vmem:[#allocation7 + $0x24] sm:$0xf]
        %v606 = vld [vmem:[#allocation7 + $0x28] sm:$0xf]
        %v607 = vld [vmem:[#allocation7 + $0x2c] sm:$0xf]
        %v608 = vld [vmem:[#allocation7 + $0x30] sm:$0xf]
        %v609 = vld [vmem:[#allocation7 + $0x34] sm:$0xf]
        %v610 = vld [vmem:[#allocation7 + $0x38] sm:$0xf]
        %v611 = vld [vmem:[#allocation7 + $0x3c] sm:$0xf]
        %v612 = vld [vmem:[%s4] sm:$0x1]
        %v614 = vlaneseq
        %v615 = vshrl.u32 %v614, 7
        %v616 = vsub.s32 0, %v615
        %v617 = vrot.slane %v612, %v616
        %v635 = vunpack.c.l.b16 %v596
        %v636 = vunpack.c.l.b16 %v597
        %v637 = vunpack.c.l.b16 %v598
        %v638 = vunpack.c.l.b16 %v599
        %v639 = vunpack.c.l.b16 %v600
        %v640 = vunpack.c.l.b16 %v601
        %v641 = vunpack.c.l.b16 %v602
        %v642 = vunpack.c.l.b16 %v603
        %v643 = vunpack.c.l.b16 %v604
        %v644 = vunpack.c.l.b16 %v605
        %v645 = vunpack.c.l.b16 %v606
        %v646 = vunpack.c.l.b16 %v607
        %v647 = vunpack.c.l.b16 %v608
        %v648 = vunpack.c.l.b16 %v609
        %v649 = vunpack.c.l.b16 %v610
        %v650 = vunpack.c.l.b16 %v611
        %v651 = vpack.c.b16 %v636, %v635
        %v652 = vpack.c.b16 %v638, %v637
        %v653 = vpack.c.b16 %v640, %v639
        %v654 = vpack.c.b16 %v642, %v641
        %v655 = vpack.c.b16 %v644, %v643
        %v656 = vpack.c.b16 %v646, %v645
        %v657 = vpack.c.b16 %v648, %v647
        %v658 = vpack.c.b16 %v650, %v649
        %667 = vmatprep.subr.bf16.mxu0 0
        %668 = vmatpush1.bf16.msra.mxu0 %v658
        %669 = vmatprep.subr.bf16.mxu0 0
        %670 = vmatpush1.bf16.msra.mxu0 %v657
        %671 = vmatprep.subr.bf16.mxu0 0
        %672 = vmatpush1.bf16.msra.mxu0 %v656
        %673 = vmatprep.subr.bf16.mxu0 0
        %674 = vmatpush1.bf16.msra.mxu0 %v655
        %675 = vmatprep.subr.bf16.mxu0 0
        %676 = vmatpush1.bf16.msra.mxu0 %v654
        %677 = vmatprep.subr.bf16.mxu0 0
        %678 = vmatpush1.bf16.msra.mxu0 %v653
        %679 = vmatprep.subr.bf16.mxu0 0
        %680 = vmatpush1.bf16.msra.mxu0 %v652
        %681 = vmatprep.subr.bf16.mxu0 0
        %682 = vmatpush1.bf16.msra.mxu0 %v651
        %683 = vmatprep.subr.bf16.mxu0 0
        %684 = vmatpush2.bf16.msra.mxu0 0
        %685 = vmatprep.subr.bf16.mxu0 0
        %686 = vmatpush2.bf16.msra.mxu0 0
        %687 = vmatprep.subr.bf16.mxu0 0
        %688 = vmatpush2.bf16.msra.mxu0 0
        %689 = vmatprep.subr.bf16.mxu0 0
        %690 = vmatpush2.bf16.msra.mxu0 0
        %691 = vmatprep.subr.bf16.mxu0 0
        %692 = vmatpush2.bf16.msra.mxu0 0
        %693 = vmatprep.subr.bf16.mxu0 0
        %694 = vmatpush2.bf16.msra.mxu0 0
        %695 = vmatprep.subr.bf16.mxu0 0
        %696 = vmatpush2.bf16.msra.mxu0 0
        %697 = vmatprep.subr.bf16.mxu0 0
        %698 = vmatpush2.bf16.msra.mxu0 0
        %699 = vmatprep.mubr.bf16.mxu0 0
        %700 = vmatmul.mubr.bf16.gmra.mxu0 %v588
        %v701 = vpop.f32.mrf.mxu0
        %v702 = vadd.f32 %v617, %v701
        %v703 = vpop.f32.mrf.mxu0
        %v704 = vpop.f32.mrf.mxu0
        %v705 = vadd.f32 %v617, %v704
        %v706 = vpop.f32.mrf.mxu0
        %707 = vmatprep.mubr.bf16.mxu0 0
        %708 = vmatmul.mubr.bf16.gmra.mxu0 %v589
        %v709 = vpop.f32.mrf.mxu0
        %v710 = vadd.f32 %v617, %v709
        %v711 = vpop.f32.mrf.mxu0
        %v712 = vpop.f32.mrf.mxu0
        %v713 = vadd.f32 %v617, %v712
        %v714 = vpop.f32.mrf.mxu0
        %715 = vmatprep.mubr.bf16.mxu0 0
        %716 = vmatmul.mubr.bf16.gmra.mxu0 %v590
        %v717 = vpop.f32.mrf.mxu0
        %v718 = vadd.f32 %v617, %v717
        %v719 = vpop.f32.mrf.mxu0
        %v720 = vpop.f32.mrf.mxu0
        %v721 = vadd.f32 %v617, %v720
        %v722 = vpop.f32.mrf.mxu0
        %723 = vmatprep.mubr.bf16.mxu0 0
        %724 = vmatmul.mubr.bf16.gmra.mxu0 %v591
        %v725 = vpop.f32.mrf.mxu0
        %v726 = vadd.f32 %v617, %v725
        %v727 = vpop.f32.mrf.mxu0
        %v728 = vpop.f32.mrf.mxu0
        %v729 = vadd.f32 %v617, %v728
        %v730 = vpop.f32.mrf.mxu0
        %731 = vmatprep.mubr.bf16.mxu0 0
        %732 = vmatmul.mubr.bf16.gmra.mxu0 %v592
        %v733 = vpop.f32.mrf.mxu0
        %v734 = vadd.f32 %v617, %v733
        %v735 = vpop.f32.mrf.mxu0
        %v736 = vpop.f32.mrf.mxu0
        %v737 = vadd.f32 %v617, %v736
        %v738 = vpop.f32.mrf.mxu0
        %739 = vmatprep.mubr.bf16.mxu0 0
        %740 = vmatmul.mubr.bf16.gmra.mxu0 %v593
        %v741 = vpop.f32.mrf.mxu0
        %v742 = vadd.f32 %v617, %v741
        %v743 = vpop.f32.mrf.mxu0
        %v744 = vpop.f32.mrf.mxu0
        %v745 = vadd.f32 %v617, %v744
        %v746 = vpop.f32.mrf.mxu0
        %747 = vmatprep.mubr.bf16.mxu0 0
        %748 = vmatmul.mubr.bf16.gmra.mxu0 %v594
        %v749 = vpop.f32.mrf.mxu0
        %v750 = vadd.f32 %v617, %v749
        %v751 = vpop.f32.mrf.mxu0
        %v752 = vpop.f32.mrf.mxu0
        %v753 = vadd.f32 %v617, %v752
        %v754 = vpop.f32.mrf.mxu0
        %755 = vmatprep.mubr.bf16.mxu0 0
        %756 = vmatmul.mubr.bf16.gmra.mxu0 %v595
        %v757 = vpop.f32.mrf.mxu0
        %v758 = vadd.f32 %v617, %v757
        %v759 = vpop.f32.mrf.mxu0
        %v760 = vpop.f32.mrf.mxu0
        %v761 = vadd.f32 %v617, %v760
        %v762 = vpop.f32.mrf.mxu0
        %763 = vdwg.mxu0
        %v764 = vmax.f32 %v702, 0.0
        %v765 = vmax.f32 %v705, 0.0
        %v766 = vmax.f32 %v710, 0.0
        %v767 = vmax.f32 %v713, 0.0
        %v768 = vmax.f32 %v718, 0.0
        %v769 = vmax.f32 %v721, 0.0
        %v770 = vmax.f32 %v726, 0.0
        %v771 = vmax.f32 %v729, 0.0
        %v772 = vmax.f32 %v734, 0.0
        %v773 = vmax.f32 %v737, 0.0
        %v774 = vmax.f32 %v742, 0.0
        %v775 = vmax.f32 %v745, 0.0
        %v776 = vmax.f32 %v750, 0.0
        %v777 = vmax.f32 %v753, 0.0
        %v778 = vmax.f32 %v758, 0.0
        %v779 = vmax.f32 %v761, 0.0
        %v780 = vld [vmem:[#allocation8] sm:$0xf]
        %v781 = vld [vmem:[#allocation8 + $0x4] sm:$0xf]
        %v782 = vld [vmem:[#allocation8 + $0x8] sm:$0xf]
        %v783 = vld [vmem:[#allocation8 + $0xc] sm:$0xf]
        %v784 = vld [vmem:[#allocation8 + $0x10] sm:$0xf]
        %v785 = vld [vmem:[#allocation8 + $0x14] sm:$0xf]
        %v786 = vld [vmem:[#allocation8 + $0x18] sm:$0xf]
        %v787 = vld [vmem:[#allocation8 + $0x1c] sm:$0xf]
        %v788 = vld [vmem:[#allocation8 + $0x20] sm:$0xf]
        %v789 = vld [vmem:[#allocation8 + $0x24] sm:$0xf]
        %v790 = vld [vmem:[#allocation8 + $0x28] sm:$0xf]
        %v791 = vld [vmem:[#allocation8 + $0x2c] sm:$0xf]
        %v792 = vld [vmem:[#allocation8 + $0x30] sm:$0xf]
        %v793 = vld [vmem:[#allocation8 + $0x34] sm:$0xf]
        %v794 = vld [vmem:[#allocation8 + $0x38] sm:$0xf]
        %v795 = vld [vmem:[#allocation8 + $0x3c] sm:$0xf]
        %v796 = vld [vmem:[%s6] sm:$0x1]
        %v798 = vlaneseq
        %v799 = vshrl.u32 %v798, 7
        %v800 = vsub.s32 0, %v799
        %v801 = vrot.slane %v796, %v800
        %v819 = vunpack.c.l.b16 %v780
        %v820 = vunpack.c.l.b16 %v781
        %v821 = vunpack.c.l.b16 %v782
        %v822 = vunpack.c.l.b16 %v783
        %v823 = vunpack.c.l.b16 %v784
        %v824 = vunpack.c.l.b16 %v785
        %v825 = vunpack.c.l.b16 %v786
        %v826 = vunpack.c.l.b16 %v787
        %v827 = vunpack.c.l.b16 %v788
        %v828 = vunpack.c.l.b16 %v789
        %v829 = vunpack.c.l.b16 %v790
        %v830 = vunpack.c.l.b16 %v791
        %v831 = vunpack.c.l.b16 %v792
        %v832 = vunpack.c.l.b16 %v793
        %v833 = vunpack.c.l.b16 %v794
        %v834 = vunpack.c.l.b16 %v795
        %v835 = vpack.c.b16 %v820, %v819
        %v836 = vpack.c.b16 %v822, %v821
        %v837 = vpack.c.b16 %v824, %v823
        %v838 = vpack.c.b16 %v826, %v825
        %v839 = vpack.c.b16 %v828, %v827
        %v840 = vpack.c.b16 %v830, %v829
        %v841 = vpack.c.b16 %v832, %v831
        %v842 = vpack.c.b16 %v834, %v833
        %851 = vmatprep.subr.bf16.mxu0 0
        %852 = vmatpush1.bf16.msra.mxu0 %v842
        %853 = vmatprep.subr.bf16.mxu0 0
        %854 = vmatpush1.bf16.msra.mxu0 %v841
        %855 = vmatprep.subr.bf16.mxu0 0
        %856 = vmatpush1.bf16.msra.mxu0 %v840
        %857 = vmatprep.subr.bf16.mxu0 0
        %858 = vmatpush1.bf16.msra.mxu0 %v839
        %859 = vmatprep.subr.bf16.mxu0 0
        %860 = vmatpush1.bf16.msra.mxu0 %v838
        %861 = vmatprep.subr.bf16.mxu0 0
        %862 = vmatpush1.bf16.msra.mxu0 %v837
        %863 = vmatprep.subr.bf16.mxu0 0
        %864 = vmatpush1.bf16.msra.mxu0 %v836
        %865 = vmatprep.subr.bf16.mxu0 0
        %866 = vmatpush1.bf16.msra.mxu0 %v835
        %867 = vmatprep.subr.bf16.mxu0 0
        %868 = vmatpush2.bf16.msra.mxu0 0
        %869 = vmatprep.subr.bf16.mxu0 0
        %870 = vmatpush2.bf16.msra.mxu0 0
        %871 = vmatprep.subr.bf16.mxu0 0
        %872 = vmatpush2.bf16.msra.mxu0 0
        %873 = vmatprep.subr.bf16.mxu0 0
        %874 = vmatpush2.bf16.msra.mxu0 0
        %875 = vmatprep.subr.bf16.mxu0 0
        %876 = vmatpush2.bf16.msra.mxu0 0
        %877 = vmatprep.subr.bf16.mxu0 0
        %878 = vmatpush2.bf16.msra.mxu0 0
        %879 = vmatprep.subr.bf16.mxu0 0
        %880 = vmatpush2.bf16.msra.mxu0 0
        %881 = vmatprep.subr.bf16.mxu0 0
        %882 = vmatpush2.bf16.msra.mxu0 0
        %883 = vmatprep.mubr.bf16.mxu0 0
        %884 = vmatmul.mubr.bf16.gmra.mxu0 %v396
        %v885 = vpop.f32.mrf.mxu0
        %v886 = vadd.f32 %v801, %v885
        %v887 = vpop.f32.mrf.mxu0
        %v888 = vpop.f32.mrf.mxu0
        %v889 = vadd.f32 %v801, %v888
        %v890 = vpop.f32.mrf.mxu0
        %891 = vmatprep.mubr.bf16.mxu0 0
        %892 = vmatmul.mubr.bf16.gmra.mxu0 %v397
        %v893 = vpop.f32.mrf.mxu0
        %v894 = vadd.f32 %v801, %v893
        %v895 = vpop.f32.mrf.mxu0
        %v896 = vpop.f32.mrf.mxu0
        %v897 = vadd.f32 %v801, %v896
        %v898 = vpop.f32.mrf.mxu0
        %899 = vmatprep.mubr.bf16.mxu0 0
        %900 = vmatmul.mubr.bf16.gmra.mxu0 %v398
        %v901 = vpop.f32.mrf.mxu0
        %v902 = vadd.f32 %v801, %v901
        %v903 = vpop.f32.mrf.mxu0
        %v904 = vpop.f32.mrf.mxu0
        %v905 = vadd.f32 %v801, %v904
        %v906 = vpop.f32.mrf.mxu0
        %907 = vmatprep.mubr.bf16.mxu0 0
        %908 = vmatmul.mubr.bf16.gmra.mxu0 %v399
        %v909 = vpop.f32.mrf.mxu0
        %v910 = vadd.f32 %v801, %v909
        %v911 = vpop.f32.mrf.mxu0
        %v912 = vpop.f32.mrf.mxu0
        %v913 = vadd.f32 %v801, %v912
        %v914 = vpop.f32.mrf.mxu0
        %915 = vmatprep.mubr.bf16.mxu0 0
        %916 = vmatmul.mubr.bf16.gmra.mxu0 %v400
        %v917 = vpop.f32.mrf.mxu0
        %v918 = vadd.f32 %v801, %v917
        %v919 = vpop.f32.mrf.mxu0
        %v920 = vpop.f32.mrf.mxu0
        %v921 = vadd.f32 %v801, %v920
        %v922 = vpop.f32.mrf.mxu0
        %923 = vmatprep.mubr.bf16.mxu0 0
        %924 = vmatmul.mubr.bf16.gmra.mxu0 %v401
        %v925 = vpop.f32.mrf.mxu0
        %v926 = vadd.f32 %v801, %v925
        %v927 = vpop.f32.mrf.mxu0
        %v928 = vpop.f32.mrf.mxu0
        %v929 = vadd.f32 %v801, %v928
        %v930 = vpop.f32.mrf.mxu0
        %931 = vmatprep.mubr.bf16.mxu0 0
        %932 = vmatmul.mubr.bf16.gmra.mxu0 %v402
        %v933 = vpop.f32.mrf.mxu0
        %v934 = vadd.f32 %v801, %v933
        %v935 = vpop.f32.mrf.mxu0
        %v936 = vpop.f32.mrf.mxu0
        %v937 = vadd.f32 %v801, %v936
        %v938 = vpop.f32.mrf.mxu0
        %939 = vmatprep.mubr.bf16.mxu0 0
        %940 = vmatmul.mubr.bf16.gmra.mxu0 %v403
        %v941 = vpop.f32.mrf.mxu0
        %v942 = vadd.f32 %v801, %v941
        %v943 = vpop.f32.mrf.mxu0
        %v944 = vpop.f32.mrf.mxu0
        %v945 = vadd.f32 %v801, %v944
        %v946 = vpop.f32.mrf.mxu0
        %947 = vdwg.mxu0
        %v948 = vmax.f32 %v886, 0.0
        %v949 = vmax.f32 %v889, 0.0
        %v950 = vmax.f32 %v894, 0.0
        %v951 = vmax.f32 %v897, 0.0
        %v952 = vmax.f32 %v902, 0.0
        %v953 = vmax.f32 %v905, 0.0
        %v954 = vmax.f32 %v910, 0.0
        %v955 = vmax.f32 %v913, 0.0
        %v956 = vmax.f32 %v918, 0.0
        %v957 = vmax.f32 %v921, 0.0
        %v958 = vmax.f32 %v926, 0.0
        %v959 = vmax.f32 %v929, 0.0
        %v960 = vmax.f32 %v934, 0.0
        %v961 = vmax.f32 %v937, 0.0
        %v962 = vmax.f32 %v942, 0.0
        %v963 = vmax.f32 %v945, 0.0
        %v964 = vpack.c.bf16 %v765, %v764
        %v965 = vpack.c.bf16 %v767, %v766
        %v966 = vpack.c.bf16 %v769, %v768
        %v967 = vpack.c.bf16 %v771, %v770
        %v968 = vpack.c.bf16 %v773, %v772
        %v969 = vpack.c.bf16 %v775, %v774
        %v970 = vpack.c.bf16 %v777, %v776
        %v971 = vpack.c.bf16 %v779, %v778
        %v980 = vunpack.c.l.b16 %v964
        %v981 = vunpack.c.h.b16 %v964
        %v982 = vunpack.c.l.b16 %v965
        %v983 = vunpack.c.h.b16 %v965
        %v984 = vunpack.c.l.b16 %v966
        %v985 = vunpack.c.h.b16 %v966
        %v986 = vunpack.c.l.b16 %v967
        %v987 = vunpack.c.h.b16 %v967
        %v988 = vunpack.c.l.b16 %v968
        %v989 = vunpack.c.h.b16 %v968
        %v990 = vunpack.c.l.b16 %v969
        %v991 = vunpack.c.h.b16 %v969
        %v992 = vunpack.c.l.b16 %v970
        %v993 = vunpack.c.h.b16 %v970
        %v994 = vunpack.c.l.b16 %v971
        %v995 = vunpack.c.h.b16 %v971
        %v996 = vpack.c.b16 %v980, %v980
        %v997 = vpack.c.b16 %v981, %v981
        %v998 = vpack.c.b16 %v982, %v982
        %v999 = vpack.c.b16 %v983, %v983
        %v1000 = vpack.c.b16 %v984, %v984
        %v1001 = vpack.c.b16 %v985, %v985
        %v1002 = vpack.c.b16 %v986, %v986
        %v1003 = vpack.c.b16 %v987, %v987
        %v1004 = vpack.c.b16 %v988, %v988
        %v1005 = vpack.c.b16 %v989, %v989
        %v1006 = vpack.c.b16 %v990, %v990
        %v1007 = vpack.c.b16 %v991, %v991
        %v1008 = vpack.c.b16 %v992, %v992
        %v1009 = vpack.c.b16 %v993, %v993
        %v1010 = vpack.c.b16 %v994, %v994
        %v1011 = vpack.c.b16 %v995, %v995
        %1028 = vst [vmem:[%s371] sm:$0xf] %v996
        %1029 = vst [vmem:[%s371 + $0x4] sm:$0xf] %v997
        %1030 = vst [vmem:[%s371 + $0x8] sm:$0xf] %v998
        %1031 = vst [vmem:[%s371 + $0xc] sm:$0xf] %v999
        %1032 = vst [vmem:[%s371 + $0x10] sm:$0xf] %v1000
        %1033 = vst [vmem:[%s371 + $0x14] sm:$0xf] %v1001
        %1034 = vst [vmem:[%s371 + $0x18] sm:$0xf] %v1002
        %1035 = vst [vmem:[%s371 + $0x1c] sm:$0xf] %v1003
        %1036 = vst [vmem:[%s371 + $0x20] sm:$0xf] %v1004
        %1037 = vst [vmem:[%s371 + $0x24] sm:$0xf] %v1005
        %1038 = vst [vmem:[%s371 + $0x28] sm:$0xf] %v1006
        %1039 = vst [vmem:[%s371 + $0x2c] sm:$0xf] %v1007
        %1040 = vst [vmem:[%s371 + $0x30] sm:$0xf] %v1008
        %1041 = vst [vmem:[%s371 + $0x34] sm:$0xf] %v1009
        %1042 = vst [vmem:[%s371 + $0x38] sm:$0xf] %v1010
        %1043 = vst [vmem:[%s371 + $0x3c] sm:$0xf] %v1011
        %v1044 = vpack.c.bf16 %v949, %v948
        %v1045 = vpack.c.bf16 %v951, %v950
        %v1046 = vpack.c.bf16 %v953, %v952
        %v1047 = vpack.c.bf16 %v955, %v954
        %v1048 = vpack.c.bf16 %v957, %v956
        %v1049 = vpack.c.bf16 %v959, %v958
        %v1050 = vpack.c.bf16 %v961, %v960
        %v1051 = vpack.c.bf16 %v963, %v962
        %v1060 = vunpack.c.l.b16 %v1044
        %v1061 = vunpack.c.h.b16 %v1044
        %v1062 = vunpack.c.l.b16 %v1045
        %v1063 = vunpack.c.h.b16 %v1045
        %v1064 = vunpack.c.l.b16 %v1046
        %v1065 = vunpack.c.h.b16 %v1046
        %v1066 = vunpack.c.l.b16 %v1047
        %v1067 = vunpack.c.h.b16 %v1047
        %v1068 = vunpack.c.l.b16 %v1048
        %v1069 = vunpack.c.h.b16 %v1048
        %v1070 = vunpack.c.l.b16 %v1049
        %v1071 = vunpack.c.h.b16 %v1049
        %v1072 = vunpack.c.l.b16 %v1050
        %v1073 = vunpack.c.h.b16 %v1050
        %v1074 = vunpack.c.l.b16 %v1051
        %v1075 = vunpack.c.h.b16 %v1051
        %v1076 = vpack.c.b16 %v1060, %v1060
        %v1077 = vpack.c.b16 %v1061, %v1061
        %v1078 = vpack.c.b16 %v1062, %v1062
        %v1079 = vpack.c.b16 %v1063, %v1063
        %v1080 = vpack.c.b16 %v1064, %v1064
        %v1081 = vpack.c.b16 %v1065, %v1065
        %v1082 = vpack.c.b16 %v1066, %v1066
        %v1083 = vpack.c.b16 %v1067, %v1067
        %v1084 = vpack.c.b16 %v1068, %v1068
        %v1085 = vpack.c.b16 %v1069, %v1069
        %v1086 = vpack.c.b16 %v1070, %v1070
        %v1087 = vpack.c.b16 %v1071, %v1071
        %v1088 = vpack.c.b16 %v1072, %v1072
        %v1089 = vpack.c.b16 %v1073, %v1073
        %v1090 = vpack.c.b16 %v1074, %v1074
        %v1091 = vpack.c.b16 %v1075, %v1075
        %1108 = vst [vmem:[%s378] sm:$0xf] %v1076
        %1109 = vst [vmem:[%s378 + $0x4] sm:$0xf] %v1077
        %1110 = vst [vmem:[%s378 + $0x8] sm:$0xf] %v1078
        %1111 = vst [vmem:[%s378 + $0xc] sm:$0xf] %v1079
        %1112 = vst [vmem:[%s378 + $0x10] sm:$0xf] %v1080
        %1113 = vst [vmem:[%s378 + $0x14] sm:$0xf] %v1081
        %1114 = vst [vmem:[%s378 + $0x18] sm:$0xf] %v1082
        %1115 = vst [vmem:[%s378 + $0x1c] sm:$0xf] %v1083
        %1116 = vst [vmem:[%s378 + $0x20] sm:$0xf] %v1084
        %1117 = vst [vmem:[%s378 + $0x24] sm:$0xf] %v1085
        %1118 = vst [vmem:[%s378 + $0x28] sm:$0xf] %v1086
        %1119 = vst [vmem:[%s378 + $0x2c] sm:$0xf] %v1087
        %1120 = vst [vmem:[%s378 + $0x30] sm:$0xf] %v1088
        %1121 = vst [vmem:[%s378 + $0x34] sm:$0xf] %v1089
        %1122 = vst [vmem:[%s378 + $0x38] sm:$0xf] %v1090
        %1123 = vst [vmem:[%s378 + $0x3c] sm:$0xf] %v1091
        %s1124 = sand.u32 %s191, 1
        %s1125 = scalar_lea.sflag [#allocation4], %s1124
        %s1126 = sand.u32 %s191, 1
        %s1127 = smul.addr %s1126, 64
        %s1128 = scalar_lea.vmem [#allocation10], %s1127
        %s1129 = sand.u32 %s217, 1
        %s1130 = scalar_lea.sflag [#allocation12], %s1129
        %s1131 = sand.u32 %s217, 1
        %s1132 = smul.addr %s1131, 64
        %s1133 = scalar_lea.vmem [#allocation11], %s1132
        // Predicated region
        $region65: #{tpu_custom_call.1} parent=47 // pred_check
          %p1134 = pneg %p201
        $region66: #{tpu_custom_call.1} parent=47 // pred_check_branch
          %1136 = sbr.rel (%p1134) target = $region68
        $region67: #{tpu_custom_call.1} parent=47 // pred_region
          %s1138 = ssub.s32 1024, 1024
          %1139 = vsyncadd %s1125, %s1138
          %s1140 = smul.addr %s31, 16
          %s1141 = smul.addr %s1140, 64
          %s1142 = scalar_lea.hbm %s7, %s1141
          %s1143 = sshll.u32 %s1128, 4
          %s1144 = int_to_ptr.vmem [resolvable:$true] %s1143
          %1149 = dma.vmem_to_hbm [thread:$0]  %s1144, 1024, %s1142, %s1125, 64, 64, 4
        $region68: #{tpu_custom_call.1} parent=47 // pred_fallthru
          _
        // Predicated region
        $region69: #{tpu_custom_call.1} parent=47 // pred_check
          %p1150 = pneg %p227
        $region70: #{tpu_custom_call.1} parent=47 // pred_check_branch
          %1152 = sbr.rel (%p1150) target = $region72
        $region71: #{tpu_custom_call.1} parent=47 // pred_region
          %s1154 = ssub.s32 1024, 1024
          %1155 = vsyncadd %s1130, %s1154
          %s1156 = smul.addr %s31, 16
          %s1157 = smul.addr %s1156, 64
          %s1158 = scalar_lea.hbm %s8, %s1157
          %s1159 = sshll.u32 %s1133, 4
          %s1160 = int_to_ptr.vmem [resolvable:$true] %s1159
          %1165 = dma.vmem_to_hbm [thread:$0]  %s1160, 1024, %s1158, %s1130, 64, 64, 4
        $region72: #{tpu_custom_call.1} parent=47 // pred_fallthru
          _
      $region48: #{tpu_custom_call.1} parent=5 // pred_fallthru
        _
      %p1166 = scmp.le.s32.totalorder 2, %s26
      // Predicated region
      $region73: #{tpu_custom_call.1} parent=5 // pred_check
        %p1167 = pneg %p1166
      $region74: #{tpu_custom_call.1} parent=5 // pred_check_branch
        %1169 = sbr.rel (%p1167) target = $region76
      $region75: #{tpu_custom_call.1} parent=5 // pred_region
        %s1170 = ssub.s32 %s26, 2
        // Predicated region
        $region77: #{tpu_custom_call.1} parent=75 // pred_check
          %p1171 = pneg %p207
        $region78: #{tpu_custom_call.1} parent=75 // pred_check_branch
          %1173 = sbr.rel (%p1171) target = $region80
        $region79: #{tpu_custom_call.1} parent=75 // pred_region
          %s1174 = sand.u32 %s192, 1
          %s1175 = scalar_lea.sflag [#allocation4], %s1174
          %s1176 = sand.u32 %s192, 1
          %s1177 = smul.addr %s1176, 64
          %s1178 = scalar_lea.vmem [#allocation10], %s1177
          %1179 = dma.done %s1175, 1024
        $region80: #{tpu_custom_call.1} parent=75 // pred_fallthru
          _
        // Predicated region
        $region81: #{tpu_custom_call.1} parent=75 // pred_check
          %p1180 = pneg %p233
        $region82: #{tpu_custom_call.1} parent=75 // pred_check_branch
          %1182 = sbr.rel (%p1180) target = $region84
        $region83: #{tpu_custom_call.1} parent=75 // pred_region
          %s1183 = sand.u32 %s218, 1
          %s1184 = scalar_lea.sflag [#allocation12], %s1183
          %s1185 = sand.u32 %s218, 1
          %s1186 = smul.addr %s1185, 64
          %s1187 = scalar_lea.vmem [#allocation11], %s1186
          %1188 = dma.done %s1184, 1024
        $region84: #{tpu_custom_call.1} parent=75 // pred_fallthru
          _
      $region76: #{tpu_custom_call.1} parent=5 // pred_fallthru
        _
    $region6: #{tpu_custom_call.1} parent=1 // loop_footer
      %s30 = sadd.s32 1, %s26
    $region7: #{tpu_custom_call.1} parent=1 // loop_footer_branch
      %25 = sbr.rel target = $region3
    $region8: #{tpu_custom_call.1} parent=1 // loop_exit
      _
    %1189 = vsyncpa [#allocation3], 1
    %s1190 = scalar_lea.sflag [#allocation3], 1
    %1191 = vsyncpa %s1190, 1
    %1192 = vsyncpa [#allocation6], 1
    %1193 = vsyncpa [#allocation9], 1
    %1194 = vsyncpa [#allocation4], 1
    %s1195 = scalar_lea.sflag [#allocation4], 1
    %1196 = vsyncpa %s1195, 1
    %1197 = vsyncpa [#allocation12], 1
    %s1198 = scalar_lea.sflag [#allocation12], 1
    %1199 = vsyncpa %s1198, 1

</llo_original>
